<compile_context>
chip_gen: v7x
topology: tpu7x:2x2x1
jax: 0.10.0
libtpu: 0.0.40
codegen_flags: <defaults>
</compile_context>

<pallas_src>
import functools

import jax
import jax.numpy as jnp
from jax.experimental import pallas as pl
from jax.experimental.pallas import tpu as pltpu


def _pick_hw_tile(c, hw, itemsize, max_buf_bytes=4 * 1024 * 1024):
    """Pick an HW tile so one (C, T) input buffer stays under ~max_buf_bytes.

    If the full HW row fits, use it (no masking needed).  Otherwise return a
    multiple of 128 lanes so the BlockSpec tiling constraint is satisfied and
    double-buffered DMA fits comfortably under every generation's scoped
    VMEM limit (v5e 16 MiB default, v6e/v7x 32 MiB default).
    """
    if c * hw * itemsize <= max_buf_bytes:
        return hw
    lanes = (max_buf_bytes // (c * itemsize)) // 128 * 128
    lanes = max(128, lanes)
    return min(lanes, hw)


def _pool_kernel(x_ref, o_ref, sum_acc, max_acc, *, hw, hw_tile, needs_mask):
    # x_ref:   (1, C, hw_tile) one batch element, one spatial tile
    # o_ref:   (1, 2, C)       lane-dense pooled output (avg row, max row)
    # sum_acc: (1, C) f32      running spatial sum (VMEM scratch)
    # max_acc: (1, C) f32      running spatial max (VMEM scratch)
    k = pl.program_id(1)

    @pl.when(k == 0)
    def _init():
        sum_acc[...] = jnp.zeros_like(sum_acc)
        max_acc[...] = jnp.full_like(max_acc, -jnp.inf)

    xb = x_ref[0].astype(jnp.float32)                      # (C, hw_tile)

    if needs_mask:
        # Last tile may run past HW; mask padded lanes (0 for sum, -inf for max).
        col = jax.lax.broadcasted_iota(jnp.int32, xb.shape, 1)
        valid = (k * hw_tile + col) < hw
        x_sum = jnp.where(valid, xb, 0.0)
        x_max = jnp.where(valid, xb, -jnp.inf)
    else:
        x_sum = xb
        x_max = xb

    c = xb.shape[0]
    sum_acc[...] += jnp.sum(x_sum, axis=1).reshape(1, c)
    max_acc[...] = jnp.maximum(max_acc[...],
                               jnp.max(x_max, axis=1).reshape(1, c))

    @pl.when(k == pl.num_programs(1) - 1)
    def _finalize():
        inv_hw = jnp.float32(1.0 / hw)          # hoisted compile-time constant
        o_ref[0] = jnp.concatenate(
            [sum_acc[...] * inv_hw, max_acc[...]], axis=0)   # (2, C)


def pooled_avg_max(x):
    """x: (N, C, H, W) -> (N, 2, C) f32 with [:,0]=avg-pool, [:,1]=max-pool."""
    N, C, H, W = x.shape
    HW = H * W
    x_flat = x.reshape(N, C, HW)

    T = _pick_hw_tile(C, HW, x.dtype.itemsize)
    nk = pl.cdiv(HW, T)
    needs_mask = (HW % T) != 0

    kernel = functools.partial(
        _pool_kernel, hw=HW, hw_tile=T, needs_mask=needs_mask)

    return pl.pallas_call(
        kernel,
        out_shape=jax.ShapeDtypeStruct((N, 2, C), jnp.float32),
        grid_spec=pltpu.PrefetchScalarGridSpec(
            num_scalar_prefetch=0,
            grid=(N, nk),                                   # (parallel, reduce)
            in_specs=[
                pl.BlockSpec((1, C, T), lambda n, k: (n, 0, k)),
            ],
            out_specs=pl.BlockSpec((1, 2, C), lambda n, k: (n, 0, 0)),
            scratch_shapes=[
                pltpu.VMEM((1, C), jnp.float32),            # running sum
                pltpu.VMEM((1, C), jnp.float32),            # running max
            ],
        ),
        compiler_params=pltpu.CompilerParams(
            dimension_semantics=("parallel", "arbitrary"),
            vmem_limit_bytes=48 * 1024 * 1024,
        ),
    )(x_flat)


def channel_attention(x, w1, w2):
    """x: (N,C,H,W); w1: (C//r, C); w2: (C, C//r)  ->  (N, C, 1, 1)."""
    N, C, H, W = x.shape

    pooled = pooled_avg_max(x)                               # (N, 2, C) f32
    avg = pooled[:, 0, :]                                    # (N, C)
    mx = pooled[:, 1, :]                                     # (N, C)

    # Shared MLP as ONE batched GEMM on (2N, C); second conv merged by linearity.
    w1f = w1.astype(jnp.float32)
    w2f = w2.astype(jnp.float32)
    h = jnp.maximum(jnp.concatenate([avg, mx], axis=0) @ w1f.T, 0.0)  # (2N, Cr)
    out = (h[:N] + h[N:]) @ w2f.T                                     # (N, C)

    return jax.nn.sigmoid(out).astype(x.dtype).reshape(N, C, 1, 1)


if __name__ == "__main__":
    # Small shapes consistent with the module: N=2, C=4, H=W=16, reduction=2.
    N, C, H, W = 2, 4, 16, 16
    reduction_ratio = 2
    Cr = C // reduction_ratio

    key = jax.random.PRNGKey(0)
    kx, k1, k2 = jax.random.split(key, 3)

    x = jax.random.normal(kx, (N, C, H, W), dtype=jnp.float32)
    # Conv2d(C, Cr, 1, bias=False) and Conv2d(Cr, C, 1, bias=False) weights,
    # stored as squeezed (out_ch, in_ch) matrices.
    w1 = 0.1 * jax.random.normal(k1, (Cr, C), dtype=jnp.float32)
    w2 = 0.1 * jax.random.normal(k2, (C, Cr), dtype=jnp.float32)

    fwd = jax.jit(channel_attention)
    out = fwd(x, w1, w2)
    jax.block_until_ready(out)

    # Pure-JAX reference of the original module's math.
    avg_ref = jnp.mean(x, axis=(2, 3))                        # (N, C)
    max_ref = jnp.max(x, axis=(2, 3))                         # (N, C)
    mlp = lambda v: (jnp.maximum(v @ w1.T, 0.0)) @ w2.T       # (N, C)
    ref = jax.nn.sigmoid(mlp(avg_ref) + mlp(max_ref)).reshape(N, C, 1, 1)

    assert out.shape == (N, C, 1, 1)
    assert jnp.allclose(out, ref, atol=1e-5, rtol=1e-5)

    print("KERNEL_OK")
</pallas_src>

<mosaic_0001>
module attributes {stable_mosaic.version = 11 : i64} {
  func.func @_pool_kernel(%arg0: i32, %arg1: i32, %arg2: memref<1x4x256xf32, #tpu.memory_space<vmem>>, %arg3: memref<1x2x4xf32, #tpu.memory_space<vmem>>, %arg4: memref<1x4xf32, #tpu.memory_space<vmem>>, %arg5: memref<1x4xf32, #tpu.memory_space<vmem>>) attributes {dimension_semantics = [#tpu.dimension_semantics<parallel>, #tpu.dimension_semantics<arbitrary>], iteration_bounds = array<i64: 2, 1>, scalar_prefetch = 0 : i64, scratch_operands = 2 : i64, tpu.core_type = #tpu.core_type<tc>, window_params = [{transform_indices = @transform_0, window_bounds = array<i64: 1, 4, 256>}, {transform_indices = @transform_1, window_bounds = array<i64: 1, 2, 4>}]} {
    %c0_i32 = arith.constant 0 : i32
    %0 = arith.cmpi eq, %arg1, %c0_i32 : i32
    %1 = arith.extui %0 : i1 to i32
    %c0_i32_0 = arith.constant 0 : i32
    %2 = arith.cmpi ne, %1, %c0_i32_0 : i32
    scf.if %2 {
      %cst_14 = arith.constant 0.000000e+00 : f32
      %18 = vector.broadcast %cst_14 : f32 to vector<1x4xf32>
      %c0_15 = arith.constant 0 : index
      %c0_16 = arith.constant 0 : index
      %19 = vector.load %arg4[%c0_15, %c0_16] : memref<1x4xf32, #tpu.memory_space<vmem>>, vector<1x4xf32>
      tpu.vector_store %arg4[%c0_15, %c0_16], %18 {strides = array<i32>} : memref<1x4xf32, #tpu.memory_space<vmem>>, vector<1x4xf32>,
      %cst_17 = arith.constant 0xFF800000 : f32
      %20 = vector.broadcast %cst_17 : f32 to vector<1x4xf32>
      %c0_18 = arith.constant 0 : index
      %c0_19 = arith.constant 0 : index
      %21 = vector.load %arg5[%c0_18, %c0_19] : memref<1x4xf32, #tpu.memory_space<vmem>>, vector<1x4xf32>
      tpu.vector_store %arg5[%c0_18, %c0_19], %20 {strides = array<i32>} : memref<1x4xf32, #tpu.memory_space<vmem>>, vector<1x4xf32>,
    } else {
    }
    %c0 = arith.constant 0 : index
    %c0_1 = arith.constant 0 : index
    %c0_2 = arith.constant 0 : index
    %3 = vector.load %arg2[%c0, %c0_1, %c0_2] : memref<1x4x256xf32, #tpu.memory_space<vmem>>, vector<1x4x256xf32>
    %4 = vector.shape_cast %3 : vector<1x4x256xf32> to vector<4x256xf32>
    %c0_3 = arith.constant 0 : index
    %c0_4 = arith.constant 0 : index
    %5 = vector.load %arg4[%c0_3, %c0_4] : memref<1x4xf32, #tpu.memory_space<vmem>>, vector<1x4xf32>
    %cst = arith.constant dense<0.000000e+00> : vector<4xf32>
    %6 = vector.multi_reduction <add>, %4, %cst [1] : vector<4x256xf32> to vector<4xf32>
    %7 = vector.shape_cast %6 : vector<4xf32> to vector<1x4xf32>
    %8 = arith.addf %5, %7 : vector<1x4xf32>
    %c0_5 = arith.constant 0 : index
    %c0_6 = arith.constant 0 : index
    %9 = vector.load %arg4[%c0_5, %c0_6] : memref<1x4xf32, #tpu.memory_space<vmem>>, vector<1x4xf32>
    tpu.vector_store %arg4[%c0_5, %c0_6], %8 {strides = array<i32>} : memref<1x4xf32, #tpu.memory_space<vmem>>, vector<1x4xf32>,
    %c0_7 = arith.constant 0 : index
    %c0_8 = arith.constant 0 : index
    %10 = vector.load %arg5[%c0_7, %c0_8] : memref<1x4xf32, #tpu.memory_space<vmem>>, vector<1x4xf32>
    %cst_9 = arith.constant dense<0xFF800000> : vector<4xf32>
    %11 = vector.multi_reduction <maximumf>, %4, %cst_9 [1] : vector<4x256xf32> to vector<4xf32>
    %12 = vector.shape_cast %11 : vector<4xf32> to vector<1x4xf32>
    %13 = arith.maximumf %10, %12 : vector<1x4xf32>
    %c0_10 = arith.constant 0 : index
    %c0_11 = arith.constant 0 : index
    %14 = vector.load %arg5[%c0_10, %c0_11] : memref<1x4xf32, #tpu.memory_space<vmem>>, vector<1x4xf32>
    tpu.vector_store %arg5[%c0_10, %c0_11], %13 {strides = array<i32>} : memref<1x4xf32, #tpu.memory_space<vmem>>, vector<1x4xf32>,
    %c0_i32_12 = arith.constant 0 : i32
    %15 = arith.cmpi eq, %arg1, %c0_i32_12 : i32
    %16 = arith.extui %15 : i1 to i32
    %c0_i32_13 = arith.constant 0 : i32
    %17 = arith.cmpi ne, %16, %c0_i32_13 : i32
    scf.if %17 {
      %c0_14 = arith.constant 0 : index
      %c0_15 = arith.constant 0 : index
      %18 = vector.load %arg4[%c0_14, %c0_15] : memref<1x4xf32, #tpu.memory_space<vmem>>, vector<1x4xf32>
      %cst_16 = arith.constant 3.906250e-03 : f32
      %19 = vector.broadcast %cst_16 : f32 to vector<1x4xf32>
      %20 = arith.mulf %18, %19 : vector<1x4xf32>
      %c0_17 = arith.constant 0 : index
      %c0_18 = arith.constant 0 : index
      %21 = vector.load %arg5[%c0_17, %c0_18] : memref<1x4xf32, #tpu.memory_space<vmem>>, vector<1x4xf32>
      %22 = tpu.concatenate %20, %21 in 0 : vector<1x4xf32>, vector<1x4xf32> -> vector<2x4xf32>
      %c0_19 = arith.constant 0 : index
      %c0_20 = arith.constant 0 : index
      %c0_21 = arith.constant 0 : index
      %23 = vector.load %arg3[%c0_19, %c0_20, %c0_21] : memref<1x2x4xf32, #tpu.memory_space<vmem>>, vector<1x2x4xf32>
      %24 = vector.shape_cast %23 : vector<1x2x4xf32> to vector<2x4xf32>
      %25 = vector.shape_cast %22 : vector<2x4xf32> to vector<1x2x4xf32>
      tpu.vector_store %arg3[%c0_19, %c0_20, %c0_21], %25 {strides = array<i32>} : memref<1x2x4xf32, #tpu.memory_space<vmem>>, vector<1x2x4xf32>,
    } else {
    }
    return
  }
  func.func @transform_0(%arg0: i32, %arg1: i32) -> (i32, i32, i32) {
    %c0_i32 = arith.constant 0 : i32
    %c0_i32_0 = arith.constant 0 : i32
    return %arg0, %c0_i32, %arg1 : i32, i32, i32
  }
  func.func @transform_1(%arg0: i32, %arg1: i32) -> (i32, i32, i32) {
    %c0_i32 = arith.constant 0 : i32
    %c0_i32_0 = arith.constant 0 : i32
    %c0_i32_1 = arith.constant 0 : i32
    return %arg0, %c0_i32, %c0_i32_0 : i32, i32, i32
  }
}

</mosaic_0001>

<llo_original>
// kernel: channel_attention.1
$region0: #{channel_attention.1}
  #allocation0 [shape = 'u32[]', space=smem, size = 0x4, offset = 0x4, fixed_abs, tag = 'smem constant byte address 0x4 - core index']
  #allocation1 [shape = 'u32[144,128]{1,0:T(1,128)}', space=vmem, size = 0x12000, scoped, tag = 'internal scratch']
  #allocation2 [shape = 'f32[1,4]{1,0:T(1,128)}', space=vmem, size = 0x200, scoped, tag = 'scratch operand']
  #allocation3 [shape = 'f32[1,4]{1,0:T(1,128)}', space=vmem, size = 0x200, scoped, tag = 'scratch operand']
  %s0 = inlined_call_operand.vmem [shape: f32[2,4,256], index: 0, kind: input, shape index: {}]
  %s1 = inlined_call_operand.vmem [shape: f32[2,2,4], index: 1, kind: output, shape index: {}]
  %s2 = sld [smem:[#allocation0]]
  $region45: #{channel_attention.1} parent=0
    _
  %s4 = ssub.s32 1, %s2
  %s5 = scalar_select 0, %s4, %s2
  loop: start=0, step=1, limit=4
  $region2: #{channel_attention.1} parent=0 // loop_pre_header
    _
  $region3: #{channel_attention.1} parent=0 // loop_header
    %s7 = sphi 0, %s11
    %p8 = scmp.ge.s32.totalorder %s7, 4
    %s14 = sphi 0, %s26
    %s15 = sphi 0, %s22
    %s16 = sphi 0, %s14
    %s17 = sphi 0, %s15
    %s18 = sphi 0, %s16
    %s19 = sphi 0, %s17
    %s31 = sphi 0, %s33
    %s34 = sphi 0, %s31
    %s35 = sphi 0, %s34
    %s51 = sphi 0, %s35
    %s57 = sphi 0, %s59
    %s60 = sphi 0, %s57
    %s61 = sphi 0, %s60
    %s77 = sphi 0, %s61
  $region4: #{channel_attention.1} parent=0 // loop_header_branch
    %10 = sbr.rel (%p8) target = $region8
  $region5: #{channel_attention.1} parent=0 // loop_body
    %s12 = ssub.s32 %s7, 1
    %s13 = ssub.s32 %s7, 2
    %s20 = sadd.s32 1, %s15
    %p21 = scmp.ge.s32.totalorder %s20, 1
    %s22 = scalar_select %p21, 0, %s20
    %s23 = sadd.s32 1, %s14
    %s24 = scalar_select %p21, %s23, %s14
    %p25 = scmp.ge.s32.totalorder %s24, 2
    %s26 = scalar_select %p25, 0, %s24
    %s27 = ssub.s32 %s14, %s26
    %s28 = ssub.s32 %s15, %s22
    %s29 = sor.u32 %s27, %s28
    %p30 = scmp.eq.s32.totalorder %s29, 0
    %s32 = sadd.s32 %s31, 1
    %s33 = scalar_select %p30, %s31, %s32
    %p36 = pneg %p30
    %p37 = scmp.eq.s32.totalorder %s7, 1
    %p38 = por %p36, %p37
    %p39 = scmp.ne.s32.totalorder %s31, %s34
    %p40 = scmp.eq.s32.totalorder %s7, 0
    %p41 = por %p39, %p40
    %p42 = scmp.ne.s32.totalorder %s31, %s34
    %p43 = scmp.eq.s32.totalorder %s12, 1
    %p44 = por %p42, %p43
    %p45 = scmp.ne.s32.totalorder %s34, %s35
    %p46 = scmp.eq.s32.totalorder %s12, 0
    %p47 = por %p45, %p46
    %p48 = scmp.ne.s32.totalorder %s34, %s35
    %p49 = scmp.eq.s32.totalorder %s13, 1
    %p50 = por %p48, %p49
    %p52 = scmp.ne.s32.totalorder %s35, %s51
    %p53 = scmp.eq.s32.totalorder %s13, 0
    %p54 = por %p52, %p53
    %s55 = ssub.s32 %s14, %s26
    %p56 = scmp.eq.s32.totalorder %s55, 0
    %s58 = sadd.s32 %s57, 1
    %s59 = scalar_select %p56, %s57, %s58
    %p62 = pneg %p56
    %p63 = scmp.eq.s32.totalorder %s7, 1
    %p64 = por %p62, %p63
    %p65 = scmp.ne.s32.totalorder %s57, %s60
    %p66 = scmp.eq.s32.totalorder %s7, 0
    %p67 = por %p65, %p66
    %p68 = scmp.ne.s32.totalorder %s57, %s60
    %p69 = scmp.eq.s32.totalorder %s12, 1
    %p70 = por %p68, %p69
    %p71 = scmp.ne.s32.totalorder %s60, %s61
    %p72 = scmp.eq.s32.totalorder %s12, 0
    %p73 = por %p71, %p72
    %p74 = scmp.ne.s32.totalorder %s60, %s61
    %p75 = scmp.eq.s32.totalorder %s13, 1
    %p76 = por %p74, %p75
    %p78 = scmp.ne.s32.totalorder %s61, %s77
    %p79 = scmp.eq.s32.totalorder %s13, 0
    %p80 = por %p78, %p79
    %p81 = scmp.le.s32.totalorder 1, %s7
    %p82 = scmp.lt.s32.totalorder %s7, 3
    %p83 = pnand %p81, %p82
    %p84 = pneg %p83
    // Predicated region
    $region9: #{channel_attention.1} parent=5 // pred_check
      _
    $region10: #{channel_attention.1} parent=5 // pred_check_branch
      %86 = sbr.rel (%p83) target = $region12
    $region11: #{channel_attention.1} parent=5 // pred_region
      %s87 = ssub.s32 %s7, 1
    $region12: #{channel_attention.1} parent=5 // pred_fallthru
      _
    %p88 = scmp.lt.s32.totalorder %s7, 2
    // Predicated region
    $region13: #{channel_attention.1} parent=5 // pred_check
      %p89 = pneg %p88
    $region14: #{channel_attention.1} parent=5 // pred_check_branch
      %91 = sbr.rel (%p89) target = $region16
    $region15: #{channel_attention.1} parent=5 // pred_region
      // Predicated region
      $region17: #{channel_attention.1} parent=15 // pred_check
        %p92 = pneg %p41
      $region18: #{channel_attention.1} parent=15 // pred_check_branch
        %94 = sbr.rel (%p92) target = $region20
      $region19: #{channel_attention.1} parent=15 // pred_region
        %s95 = smul.u32 2, %s15
        %p96 = scmp.lt.s32.totalorder %s14, 1
        %s97 = scalar_select %p96, %s14, 1
        %p98 = scmp.lt.s32.totalorder %s95, 1
        %s99 = scalar_select %p98, %s95, 1
        %s100 = smul.addr %s97, 2
        %s101 = sadd.s32 %s99, %s100
        %s102 = smul.addr %s101, 4
        %s103 = scalar_lea.vmem %s0, %s102
        %s104 = smul.u32 2, %s15
      $region20: #{channel_attention.1} parent=15 // pred_fallthru
        _
    $region16: #{channel_attention.1} parent=5 // pred_fallthru
      _
    %p105 = scmp.le.s32.totalorder 1, %s7
    %p106 = scmp.lt.s32.totalorder %s7, 3
    %p107 = pnand %p105, %p106
    %p108 = pneg %p107
    // Predicated region
    $region21: #{channel_attention.1} parent=5 // pred_check
      _
    $region22: #{channel_attention.1} parent=5 // pred_check_branch
      %110 = sbr.rel (%p107) target = $region24
    $region23: #{channel_attention.1} parent=5 // pred_region
      %s111 = ssub.s32 %s7, 1
      %s112 = smul.u32 2, %s17
      %p113 = scmp.lt.s32.totalorder %s16, 1
      %s114 = scalar_select %p113, %s16, 1
      %p115 = scmp.lt.s32.totalorder %s112, 1
      %s116 = scalar_select %p115, %s112, 1
      %s117 = smul.addr %s114, 2
      %s118 = sadd.s32 %s116, %s117
      %s119 = smul.addr %s118, 4
      %s120 = scalar_lea.vmem %s0, %s119
      %p121 = pneg %p47
      %p122 = pneg %p44
      %p123 = pneg %p73
      %p124 = pneg %p70
      %p125 = scmp.lt.s32.totalorder %s16, 1
      %s126 = scalar_select %p125, %s16, 1
      %s127 = smul.addr %s126, 2
      %s128 = scalar_lea.vmem %s1, %s127
      %s129 = smul.u32 2, %s17
      %p130 = scmp.lt.s32.totalorder %s16, 1
      %s131 = scalar_select %p130, %s16, 1
      %p132 = scmp.lt.s32.totalorder %s129, 1
      %s133 = scalar_select %p132, %s129, 1
      %s134 = smul.addr %s131, 2
      %s135 = sadd.s32 %s133, %s134
      %s136 = smul.addr %s135, 4
      %s137 = scalar_lea.vmem %s0, %s136
      %s138 = smul.u32 2, %s17
      %p139 = scmp.lt.s32.totalorder %s16, 1
      %s140 = scalar_select %p139, %s16, 1
      %s141 = smul.addr %s140, 2
      %s142 = scalar_lea.vmem %s1, %s141
      %p143 = scmp.eq.s32.totalorder %s17, 0
      // Predicated region
      $region25: #{channel_attention.1} parent=23 // pred_check
        %p144 = pneg %p143
      $region26: #{channel_attention.1} parent=23 // pred_check_branch
        %146 = sbr.rel (%p144) target = $region28
      $region27: #{channel_attention.1} parent=23 // pred_region
        %vm147 = vcmask 24576
        %148 = vst.msk [vmem:[#allocation2] sm:$0x1] %vm147, 0.0
        %149 = vst.msk [vmem:[#allocation3] sm:$0x1] %vm147, -inf
      $region28: #{channel_attention.1} parent=23 // pred_fallthru
        _
      %v150 = vld [vmem:[%s137] sm:$0xff]
      %v151 = vld [vmem:[#allocation2] sm:$0x1]
      %v153 = vcombine.high %v150, %v150
      %vm155 = vcmask 1043456
      %v156 = vsel %vm155, %v150, 0.0
      %v157 = vsel %vm155, %v153, 0.0
      %v158 = vadd.f32 %v156, %v157
      %159 = vadd.xlane.f32.xlu0 %v158
      %v160 = vpop.xlane.xlu0 %159
      %v162 = vlaneseq
      %v163 = vshrl.u32 %v162, 7
      %v164 = vsub.s32 0, %v163
      %v165 = vrot.slane %v160, %v164
      %v166 = vlaneseq
      %v167 = vshrl.u32 %v166, 7
      %v168 = vsub.s32 1, %v167
      %v169 = vrot.slane %v160, %v168
      %v170 = vlaneseq
      %v171 = vshrl.u32 %v170, 7
      %v172 = vsub.s32 2, %v171
      %v173 = vrot.slane %v160, %v172
      %v174 = vlaneseq
      %v175 = vshrl.u32 %v174, 7
      %v176 = vsub.s32 3, %v175
      %v177 = vrot.slane %v160, %v176
      %v178 = vcombine.low %v165, %v169
      %v179 = vcombine.low %v173, %v177
      %v181 = vunpack.c.l.s4 1966171168
      %v182 = vunpack.c.0.s8 %v181
      %v183 = vlaneseq
      %v184 = vshrl.u32 %v183, 7
      %v185 = vsub.s32 %v182, %v184
      %v186 = vrot.slane %v178, %v185
      %v188 = vunpack.c.l.s4 1966171168
      %v189 = vunpack.c.0.s8 %v188
      %v190 = vlaneseq
      %v191 = vshrl.u32 %v190, 7
      %v192 = vsub.s32 %v189, %v191
      %v193 = vrot.slane %v179, %v192
      %v194 = vcombine.low %v186, %v193
      %v196 = vunpack.c.l.s4 1966171168
      %v197 = vunpack.c.0.s8 %v196
      %v198 = vlaneseq
      %v199 = vshrl.u32 %v198, 7
      %v200 = vsub.s32 %v197, %v199
      %v201 = vrot.slane %v194, %v200
      %202 = vset.pattern.permute.xlu0 0
      %203 = vperm.xlu0 %202, %v201
      %v204 = vpop.permute.xlu0 %203
      %v205 = vlaneseq
      %v206 = vand.u32 %v205, 127
      %v207 = vlaneseq
      %v208 = vshrl.u32 %v207, 7
      %v209 = vsub.s32 %v206, %v208
      %v210 = vrot.slane %v204, %v209
      %v212 = vunpack.c.l.s4 1966171168
      %v213 = vunpack.c.0.s8 %v212
      %v214 = vlaneseq
      %v215 = vshrl.u32 %v214, 7
      %v216 = vsub.s32 %v213, %v215
      %v217 = vrot.slane %v210, %v216
      %v219 = vunpack.c.l.s4 1966171168
      %v220 = vunpack.c.0.s8 %v219
      %v221 = vlaneseq
      %v222 = vshrl.u32 %v221, 7
      %v223 = vsub.s32 %v220, %v222
      %v224 = vrot.slane %v217, %v223
      %v226 = vadd.f32 %v151, %v224
      %vm227 = vcmask 24576
      %228 = vst.msk [vmem:[#allocation2] sm:$0x1] %vm227, %v226
      %v229 = vld [vmem:[#allocation3] sm:$0x1]
      %v230 = vsel %vm155, %v150, -inf
      %v231 = vsel %vm155, %v153, -inf
      %v232 = vmax.f32 %v230, %v231
      %233 = vmax.xlane.f32.xlu0 %v232
      %v234 = vpop.xlane.xlu0 %233
      %v236 = vlaneseq
      %v237 = vshrl.u32 %v236, 7
      %v238 = vsub.s32 0, %v237
      %v239 = vrot.slane %v234, %v238
      %v240 = vlaneseq
      %v241 = vshrl.u32 %v240, 7
      %v242 = vsub.s32 1, %v241
      %v243 = vrot.slane %v234, %v242
      %v244 = vlaneseq
      %v245 = vshrl.u32 %v244, 7
      %v246 = vsub.s32 2, %v245
      %v247 = vrot.slane %v234, %v246
      %v248 = vlaneseq
      %v249 = vshrl.u32 %v248, 7
      %v250 = vsub.s32 3, %v249
      %v251 = vrot.slane %v234, %v250
      %v252 = vcombine.low %v239, %v243
      %v253 = vcombine.low %v247, %v251
      %v255 = vunpack.c.l.s4 1966171168
      %v256 = vunpack.c.0.s8 %v255
      %v257 = vlaneseq
      %v258 = vshrl.u32 %v257, 7
      %v259 = vsub.s32 %v256, %v258
      %v260 = vrot.slane %v252, %v259
      %v262 = vunpack.c.l.s4 1966171168
      %v263 = vunpack.c.0.s8 %v262
      %v264 = vlaneseq
      %v265 = vshrl.u32 %v264, 7
      %v266 = vsub.s32 %v263, %v265
      %v267 = vrot.slane %v253, %v266
      %v268 = vcombine.low %v260, %v267
      %v270 = vunpack.c.l.s4 1966171168
      %v271 = vunpack.c.0.s8 %v270
      %v272 = vlaneseq
      %v273 = vshrl.u32 %v272, 7
      %v274 = vsub.s32 %v271, %v273
      %v275 = vrot.slane %v268, %v274
      %276 = vset.pattern.permute.xlu0 0
      %277 = vperm.xlu0 %276, %v275
      %v278 = vpop.permute.xlu0 %277
      %v279 = vlaneseq
      %v280 = vshrl.u32 %v279, 7
      %v281 = vsub.s32 %v206, %v280
      %v282 = vrot.slane %v278, %v281
      %v284 = vunpack.c.l.s4 1966171168
      %v285 = vunpack.c.0.s8 %v284
      %v286 = vlaneseq
      %v287 = vshrl.u32 %v286, 7
      %v288 = vsub.s32 %v285, %v287
      %v289 = vrot.slane %v282, %v288
      %v291 = vunpack.c.l.s4 1966171168
      %v292 = vunpack.c.0.s8 %v291
      %v293 = vlaneseq
      %v294 = vshrl.u32 %v293, 7
      %v295 = vsub.s32 %v292, %v294
      %v296 = vrot.slane %v289, %v295
      %v298 = vmax.f32 %v229, %v296
      %299 = vst.msk [vmem:[#allocation3] sm:$0x1] %vm227, %v298
      // Predicated region
      $region29: #{channel_attention.1} parent=23 // pred_check
        %p300 = pneg %p143
      $region30: #{channel_attention.1} parent=23 // pred_check_branch
        %302 = sbr.rel (%p300) target = $region32
      $region31: #{channel_attention.1} parent=23 // pred_region
        %v303 = vld [vmem:[#allocation2] sm:$0x1]
        %v304 = vmul.f32 %v303, 0.00390625
        %v305 = vld [vmem:[#allocation3] sm:$0x1]
        %v307 = vlaneseq
        %v308 = vshrl.u32 %v307, 7
        %v309 = vsub.s32 0, %v308
        %v310 = vrot.slane %v305, %v309
        %vm312 = vcmask 1040384
        %v313 = vsel %vm312, %v304, %v310
        %vm314 = vcmask 25600
        %315 = vst.msk [vmem:[%s142] sm:$0x3] %vm314, %v313
      $region32: #{channel_attention.1} parent=23 // pred_fallthru
        _
      %p316 = scmp.lt.s32.totalorder %s16, 1
      %s317 = scalar_select %p316, %s16, 1
      %s318 = smul.addr %s317, 2
      %s319 = scalar_lea.vmem %s1, %s318
      // Predicated region
      $region33: #{channel_attention.1} parent=23 // pred_check
        %p320 = pneg %p70
      $region34: #{channel_attention.1} parent=23 // pred_check_branch
        %322 = sbr.rel (%p320) target = $region36
      $region35: #{channel_attention.1} parent=23 // pred_region
        _
      $region36: #{channel_attention.1} parent=23 // pred_fallthru
        _
    $region24: #{channel_attention.1} parent=5 // pred_fallthru
      _
    %p323 = scmp.le.s32.totalorder 2, %s7
    // Predicated region
    $region37: #{channel_attention.1} parent=5 // pred_check
      %p324 = pneg %p323
    $region38: #{channel_attention.1} parent=5 // pred_check_branch
      %326 = sbr.rel (%p324) target = $region40
    $region39: #{channel_attention.1} parent=5 // pred_region
      %s327 = ssub.s32 %s7, 2
      // Predicated region
      $region41: #{channel_attention.1} parent=39 // pred_check
        %p328 = pneg %p76
      $region42: #{channel_attention.1} parent=39 // pred_check_branch
        %330 = sbr.rel (%p328) target = $region44
      $region43: #{channel_attention.1} parent=39 // pred_region
        %p331 = scmp.lt.s32.totalorder %s18, 1
        %s332 = scalar_select %p331, %s18, 1
        %s333 = smul.addr %s332, 2
        %s334 = scalar_lea.vmem %s1, %s333
      $region44: #{channel_attention.1} parent=39 // pred_fallthru
        _
    $region40: #{channel_attention.1} parent=5 // pred_fallthru
      _
  $region6: #{channel_attention.1} parent=0 // loop_footer
    %s11 = sadd.s32 1, %s7
  $region7: #{channel_attention.1} parent=0 // loop_footer_branch
    %6 = sbr.rel target = $region3
  $region8: #{channel_attention.1} parent=0 // loop_exit
    _

</llo_original>
